<compile_context>
chip_gen: v7x
topology: tpu7x:2x2x1
jax: 0.10.0
libtpu: 0.0.40
codegen_flags: <defaults>
</compile_context>

<pallas_src>
import functools

import numpy as np
import jax
import jax.numpy as jnp
from jax.experimental import pallas as pl
from jax.experimental.pallas import tpu as pltpu

_LANES = 128
_SUBLANES = 8
_MAX_ROW_BLOCK = 512          # 512*128*4B*3 planes ~= 0.75 MiB per grid step
_CIDER_REWARD_WEIGHT = 1.0


def _scst_kernel(buf_ref, out_ref, acc_ref, *, inv_n, weight):
    """buf_ref: (3, row_block, 128) VMEM slab = [reward, baseline, logp].
    out_ref: (2,) SMEM = [loss, cur_score].  acc_ref: (2,) SMEM scratch."""
    step = pl.program_id(0)

    @pl.when(step == 0)
    def _init():
        acc_ref[0] = jnp.float32(0.0)
        acc_ref[1] = jnp.float32(0.0)

    # Cast on load (keeps v5e on its native f32 VALU path even for bf16 in).
    reward = buf_ref[0].astype(jnp.float32)     # (row_block, 128)
    baseline = buf_ref[1].astype(jnp.float32)   # (row_block, 128)
    logp = buf_ref[2].astype(jnp.float32)       # (row_block, 128)
    if weight != 1.0:  # trace-time constant; skipped entirely for weight == 1
        reward = reward * weight
        baseline = baseline * weight

    # Zero padding contributes 0 to both sums (reward == baseline == logp == 0
    # in the padded tail), so dividing by the true B*K is exact.
    acc_ref[0] = acc_ref[0] + jnp.sum(logp * (reward - baseline))
    acc_ref[1] = acc_ref[1] + jnp.sum(reward)

    @pl.when(step == pl.num_programs(0) - 1)
    def _finalize():
        out_ref[0] = acc_ref[0] * (-inv_n)   # negation folded into constant
        out_ref[1] = acc_ref[1] * inv_n      # cur score (pre-baseline mean)


@functools.partial(jax.jit, static_argnames=("max_row_block",))
def _scst_loss_and_score(sample_scores, greedy_scores, sample_logprobs,
                         *, max_row_block=_MAX_ROW_BLOCK):
    """sample_scores: (B*K,) rewards for sampled captions,
    greedy_scores: (B,) rewards for greedy captions (baseline),
    sample_logprobs: (B*K,) per-sequence summed log-probs.
    Returns (loss, cur_score) as f32 scalars."""
    B = greedy_scores.shape[0]
    n = sample_scores.shape[0]
    if n % B != 0:
        raise ValueError(f"sample count {n} not divisible by batch size {B}")
    if sample_logprobs.shape[0] != n:
        raise ValueError("sample_logprobs must match sample_scores length")
    K = n // B

    # Rows rounded up to whole (8,128) tiles; then (if needed) to a multiple
    # of the row block so the 1-D reduction grid divides evenly.
    rows = _SUBLANES * pl.cdiv(pl.cdiv(n, _LANES), _SUBLANES)
    if rows <= max_row_block:
        row_block = rows
    else:
        row_block = max_row_block
        rows = row_block * pl.cdiv(rows, row_block)
    pad = rows * _LANES - n
    grid = (rows // row_block,)

    # Baseline broadcast to one entry per sampled caption; with
    # allow_input_fusion the repeat/stack/pad/reshape chain fuses into the
    # pallas_call operand instead of materializing a padded slab in HBM.
    scores_flat = sample_scores.astype(jnp.float32)
    baseline_flat = jnp.repeat(greedy_scores.astype(jnp.float32), K)
    logp_flat = sample_logprobs.astype(jnp.float32)
    stacked = jnp.stack([scores_flat, baseline_flat, logp_flat])   # (3, n)
    if pad:
        stacked = jnp.pad(stacked, ((0, 0), (0, pad)))
    slab = stacked.reshape(3, rows, _LANES)                        # one input

    out = pl.pallas_call(
        functools.partial(_scst_kernel,
                          inv_n=1.0 / float(n),
                          weight=float(_CIDER_REWARD_WEIGHT)),
        out_shape=jax.ShapeDtypeStruct((2,), jnp.float32),
        grid_spec=pltpu.PrefetchScalarGridSpec(
            num_scalar_prefetch=0,
            grid=grid,
            in_specs=[pl.BlockSpec((3, row_block, _LANES),
                                   lambda i: (0, i, 0))],
            out_specs=pl.BlockSpec(memory_space=pltpu.MemorySpace.SMEM),
            scratch_shapes=[pltpu.SMEM((2,), jnp.float32)]),
        compiler_params=pltpu.CompilerParams(
            dimension_semantics=("arbitrary",),
            allow_input_fusion=[True]),
    )(slab)
    return out[0], out[1]


class ScstRewardCriterionPallas:
    """baseline_type='greedy' variant of ScstRewardCriterion.

    The CIDEr-D / METEOR scorer operates on strings; its numeric output
    (`scores`) is taken as an input here.
    """
    # TODO(synk): CIDEr-D / METEOR string scoring has no Pallas equivalent;
    # scores are supplied as precomputed floats.

    CIDER_REWARD_WEIGHT = _CIDER_REWARD_WEIGHT

    def __init__(self):
        self._cur_score = None

    def forward(self, sample_scores, greedy_scores, sample_logprobs):
        loss, cur = _scst_loss_and_score(sample_scores, greedy_scores,
                                         sample_logprobs)
        self._cur_score = cur
        return loss

    __call__ = forward

    def get_score(self):
        return self._cur_score


def _reference(sample_scores, greedy_scores, sample_logprobs):
    """Pure numpy reference mirroring the PyTorch forward (greedy baseline)."""
    B = greedy_scores.shape[0]
    K = sample_scores.shape[0] // B
    baseline = greedy_scores[:, np.newaxis]                 # (B, 1)
    reward = sample_scores.reshape(B, K)                    # (B, K)
    cur = reward.mean()
    reward = reward - baseline
    reward = reward.reshape(B * K)
    loss = (-sample_logprobs * reward).mean()
    return np.float32(loss), np.float32(cur)


def _make_inputs(B, K, seed):
    key = jax.random.PRNGKey(seed)
    k1, k2, k3 = jax.random.split(key, 3)
    # Deterministic surrogate for CIDEr-D scores (would come from the scorer).
    sample_scores = jax.random.uniform(k1, (B * K,), jnp.float32) * 2.0
    greedy_scores = jax.random.uniform(k2, (B,), jnp.float32) * 2.0
    # Per-sequence summed log-probs are negative.
    sample_logprobs = -jax.random.uniform(k3, (B * K,), jnp.float32) * 5.0
    return sample_scores, greedy_scores, sample_logprobs


def _check(loss, cur, sample_scores, greedy_scores, sample_logprobs, tag):
    ref_loss, ref_cur = _reference(np.asarray(sample_scores),
                                   np.asarray(greedy_scores),
                                   np.asarray(sample_logprobs))
    assert np.allclose(np.asarray(loss), ref_loss, rtol=1e-5, atol=1e-5), \
        (tag, loss, ref_loss)
    assert np.allclose(np.asarray(cur), ref_cur, rtol=1e-5, atol=1e-5), \
        (tag, cur, ref_cur)


def _run_case(B, K, seed):
    ss, gs, lp = _make_inputs(B, K, seed)
    crit = ScstRewardCriterionPallas()
    loss = crit.forward(ss, gs, lp)
    loss = jax.block_until_ready(loss)
    cur = jax.block_until_ready(crit.get_score())
    _check(loss, cur, ss, gs, lp, (B, K))


def _run_grid_case(B, K, seed, max_row_block):
    # Exercise the multi-step reduction grid path (partial-sum accumulation)
    # at small sizes by forcing a tiny row block.
    ss, gs, lp = _make_inputs(B, K, seed)
    loss, cur = _scst_loss_and_score(ss, gs, lp, max_row_block=max_row_block)
    loss = jax.block_until_ready(loss)
    cur = jax.block_until_ready(cur)
    _check(loss, cur, ss, gs, lp, (B, K, max_row_block))


if __name__ == "__main__":
    # small shapes: batch=2 images, 4 sampled captions per image (n < 128)
    _run_case(B=2, K=4, seed=0)
    # multi-row slab with a ragged tail (n = 200 -> 8 padded rows)
    _run_case(B=40, K=5, seed=1)
    # force a 2-step reduction grid (n = 1200 -> 16 rows, row_block = 8)
    _run_grid_case(B=12, K=100, seed=2, max_row_block=8)
    print("KERNEL_OK")
</pallas_src>

<mosaic_0001>
module attributes {stable_mosaic.version = 11 : i64} {
  func.func @_scst_kernel(%arg0: i32, %arg1: memref<3x8x128xf32, #tpu.memory_space<vmem>>, %arg2: memref<2xf32, #tpu.memory_space<smem>>, %arg3: memref<2xf32, #tpu.memory_space<smem>>) attributes {dimension_semantics = [#tpu.dimension_semantics<arbitrary>], iteration_bounds = array<i64: 1>, scalar_prefetch = 0 : i64, scratch_operands = 1 : i64, tpu.core_type = #tpu.core_type<tc>, window_params = [{transform_indices = @transform_0, window_bounds = array<i64: 3, 8, 128>}, {transform_indices = @transform_1, window_bounds = array<i64: 2>}]} {
    %c0_i32 = arith.constant 0 : i32
    %0 = arith.cmpi eq, %arg0, %c0_i32 : i32
    %1 = arith.extui %0 : i1 to i32
    %c0_i32_0 = arith.constant 0 : i32
    %2 = arith.cmpi ne, %1, %c0_i32_0 : i32
    scf.if %2 {
      %cst_14 = arith.constant 0.000000e+00 : f32
      %c0_15 = arith.constant 0 : index
      %28 = memref.load %arg3[%c0_15] : memref<2xf32, #tpu.memory_space<smem>>
      memref.store %cst_14, %arg3[%c0_15] : memref<2xf32, #tpu.memory_space<smem>>
      %cst_16 = arith.constant 0.000000e+00 : f32
      %c1_17 = arith.constant 1 : index
      %29 = memref.load %arg3[%c1_17] : memref<2xf32, #tpu.memory_space<smem>>
      memref.store %cst_16, %arg3[%c1_17] : memref<2xf32, #tpu.memory_space<smem>>
    } else {
    }
    %c0 = arith.constant 0 : index
    %c0_1 = arith.constant 0 : index
    %c0_2 = arith.constant 0 : index
    %3 = vector.load %arg1[%c0, %c0_1, %c0_2] : memref<3x8x128xf32, #tpu.memory_space<vmem>>, vector<1x8x128xf32>
    %4 = vector.shape_cast %3 : vector<1x8x128xf32> to vector<8x128xf32>
    %c1 = arith.constant 1 : index
    %c0_3 = arith.constant 0 : index
    %c0_4 = arith.constant 0 : index
    %5 = vector.load %arg1[%c1, %c0_3, %c0_4] : memref<3x8x128xf32, #tpu.memory_space<vmem>>, vector<1x8x128xf32>
    %6 = vector.shape_cast %5 : vector<1x8x128xf32> to vector<8x128xf32>
    %c2 = arith.constant 2 : index
    %c0_5 = arith.constant 0 : index
    %c0_6 = arith.constant 0 : index
    %7 = vector.load %arg1[%c2, %c0_5, %c0_6] : memref<3x8x128xf32, #tpu.memory_space<vmem>>, vector<1x8x128xf32>
    %8 = vector.shape_cast %7 : vector<1x8x128xf32> to vector<8x128xf32>
    %c0_7 = arith.constant 0 : index
    %9 = memref.load %arg3[%c0_7] : memref<2xf32, #tpu.memory_space<smem>>
    %10 = arith.subf %4, %6 : vector<8x128xf32>
    %11 = arith.mulf %8, %10 : vector<8x128xf32>
    %12 = vector.shape_cast %11 : vector<8x128xf32> to vector<1x8x128xf32>
    %cst = arith.constant dense<0.000000e+00> : vector<1xf32>
    %13 = vector.multi_reduction <add>, %12, %cst [1, 2] : vector<1x8x128xf32> to vector<1xf32>
    %14 = vector.shape_cast %13 : vector<1xf32> to vector<1x1x1xf32>
    %15 = vector.extract %14[0, 0, 0] : f32 from vector<1x1x1xf32>
    %16 = arith.addf %9, %15 : f32
    %c0_8 = arith.constant 0 : index
    %17 = memref.load %arg3[%c0_8] : memref<2xf32, #tpu.memory_space<smem>>
    memref.store %16, %arg3[%c0_8] : memref<2xf32, #tpu.memory_space<smem>>
    %c1_9 = arith.constant 1 : index
    %18 = memref.load %arg3[%c1_9] : memref<2xf32, #tpu.memory_space<smem>>
    %19 = vector.shape_cast %4 : vector<8x128xf32> to vector<1x8x128xf32>
    %cst_10 = arith.constant dense<0.000000e+00> : vector<1xf32>
    %20 = vector.multi_reduction <add>, %19, %cst_10 [1, 2] : vector<1x8x128xf32> to vector<1xf32>
    %21 = vector.shape_cast %20 : vector<1xf32> to vector<1x1x1xf32>
    %22 = vector.extract %21[0, 0, 0] : f32 from vector<1x1x1xf32>
    %23 = arith.addf %18, %22 : f32
    %c1_11 = arith.constant 1 : index
    %24 = memref.load %arg3[%c1_11] : memref<2xf32, #tpu.memory_space<smem>>
    memref.store %23, %arg3[%c1_11] : memref<2xf32, #tpu.memory_space<smem>>
    %c0_i32_12 = arith.constant 0 : i32
    %25 = arith.cmpi eq, %arg0, %c0_i32_12 : i32
    %26 = arith.extui %25 : i1 to i32
    %c0_i32_13 = arith.constant 0 : i32
    %27 = arith.cmpi ne, %26, %c0_i32_13 : i32
    scf.if %27 {
      %c0_14 = arith.constant 0 : index
      %28 = memref.load %arg3[%c0_14] : memref<2xf32, #tpu.memory_space<smem>>
      %cst_15 = arith.constant -1.250000e-01 : f32
      %29 = arith.mulf %28, %cst_15 : f32
      %c0_16 = arith.constant 0 : index
      %30 = memref.load %arg2[%c0_16] : memref<2xf32, #tpu.memory_space<smem>>
      memref.store %29, %arg2[%c0_16] : memref<2xf32, #tpu.memory_space<smem>>
      %c1_17 = arith.constant 1 : index
      %31 = memref.load %arg3[%c1_17] : memref<2xf32, #tpu.memory_space<smem>>
      %cst_18 = arith.constant 1.250000e-01 : f32
      %32 = arith.mulf %31, %cst_18 : f32
      %c1_19 = arith.constant 1 : index
      %33 = memref.load %arg2[%c1_19] : memref<2xf32, #tpu.memory_space<smem>>
      memref.store %32, %arg2[%c1_19] : memref<2xf32, #tpu.memory_space<smem>>
    } else {
    }
    return
  }
  func.func @transform_0(%arg0: i32) -> (i32, i32, i32) {
    %c0_i32 = arith.constant 0 : i32
    %c0_i32_0 = arith.constant 0 : i32
    %c0_i32_1 = arith.constant 0 : i32
    return %c0_i32, %arg0, %c0_i32_0 : i32, i32, i32
  }
  func.func @transform_1(%arg0: i32) -> i32 {
    %c0_i32 = arith.constant 0 : i32
    %c0_i32_0 = arith.constant 0 : i32
    return %c0_i32 : i32
  }
}

</mosaic_0001>

<llo_original>
// kernel: _scst_loss_and_score.2
$region0: #{_scst_loss_and_score.2}
  #allocation0 [shape = 'u32[]', space=smem, size = 0x4, offset = 0x4, fixed_abs, tag = 'smem constant byte address 0x4 - core index']
  #allocation1 [shape = 'u32[144,128]{1,0:T(1,128)}', space=vmem, size = 0x12000, scoped, tag = 'internal scratch']
  #allocation2 [shape = 'f32[2]{0:T(128)}', space=smem, size = 0x200, scoped, tag = 'scratch operand']
  %s0 = inlined_call_operand.vmem [shape: f32[1,3,8,128], index: 0, kind: input, shape index: {}]
  %s1 = inlined_call_operand.vmem [shape: f32[2], index: 1, kind: output, shape index: {}]
  %s2 = sld [smem:[#allocation0]]
  $region22: #{_scst_loss_and_score.2} parent=0
    _
  %s4 = ssub.s32 1, %s2
  %s5 = scalar_select 0, %s4, %s2
  $region1: #{_scst_loss_and_score.2} parent=0
    #allocation3 [shape = 'u8[512]{0}', space=smem, size = 0x200, scoped, tag = 'output window, operand 0, single buffered']
    #allocation4 [shape = 's32[1]{0}', space=sflag, size = 0x4, scoped, tag = 'scoped memory for _scst_loss_and_score.2']
    #allocation5 [shape = 'u8[12288]{0}', space=vmem, size = 0x3000, dematerialized = true, scoped, tag = 'FusionAdapter Buffer %fusion.2 = f32[3,8,128]{2,1,0:T(8,128)} fusion(%param_0.12), kind=kLoop, calls=%fused_computation.5.clone, metadata={op_name="jit(_scst_loss_and_score)/reshape" stack_frame_id=12}']
    %6 = vsyncpa [#allocation4], 0
    // Predicated region
    $region2: #{_scst_loss_and_score.2} parent=1 // pred_check
      _
    $region3: #{_scst_loss_and_score.2} parent=1 // pred_check_branch
      %8 = sbr.rel (0) target = $region5
    $region4: #{_scst_loss_and_score.2} parent=1 // pred_region
      _
    $region5: #{_scst_loss_and_score.2} parent=1 // pred_fallthru
      _
    %v9 = vld [vmem:[%s0] sm:$0xff]
    %11 = vst [vmem:[#allocation5] sm:$0xff] %v9
    %s12 = scalar_lea.vmem %s0, 8
    %v13 = vld [vmem:[%s12] sm:$0xff]
    %s14 = scalar_lea.vmem [#allocation5], 8
    %16 = vst [vmem:[%s14] sm:$0xff] %v13
    %s17 = scalar_lea.vmem %s0, 16
    %v18 = vld [vmem:[%s17] sm:$0xff]
    %s19 = scalar_lea.vmem [#allocation5], 16
    %21 = vst [vmem:[%s19] sm:$0xff] %v18
    %p22 = scmp.eq.s32.totalorder 0, 0
    // Predicated region
    $region6: #{_scst_loss_and_score.2} parent=1 // pred_check
      %p23 = pneg %p22
    $region7: #{_scst_loss_and_score.2} parent=1 // pred_check_branch
      %25 = sbr.rel (%p23) target = $region9
    $region8: #{_scst_loss_and_score.2} parent=1 // pred_region
      %s26 = scalar_lea.smem [#allocation2], 0
      %27 = sst [smem:[%s26]] 0.0
      %s28 = scalar_lea.smem [#allocation2], 1
      %29 = sst [smem:[%s28]] 0.0
    $region9: #{_scst_loss_and_score.2} parent=1 // pred_fallthru
      _
    %v30 = vld [vmem:[#allocation5] sm:$0xff]
    %s31 = scalar_lea.vmem [#allocation5], 8
    %v32 = vld [vmem:[%s31] sm:$0xff]
    %s33 = scalar_lea.vmem [#allocation5], 16
    %v34 = vld [vmem:[%s33] sm:$0xff]
    %s35 = sld [smem:[#allocation2]]
    %v36 = vsub.f32 %v30, %v32
    %v37 = vmul.f32 %v34, %v36
    %38 = vadd.xlane.f32.xlu0 %v37
    %v39 = vpop.xlane.xlu0 %38
    %v40 = vrot.slane %v39, 4
    %v41 = vadd.f32 %v39, %v40
    %v42 = vrot.slane %v41, 2
    %v43 = vadd.f32 %v41, %v42
    %v44 = vrot.slane %v43, 1
    %v45 = vadd.f32 %v43, %v44
    %s46 = vtos %v45
    %s47 = sadd.f32 %s35, %s46
    %s48 = scalar_lea.smem [#allocation2], 0
    %49 = sst [smem:[%s48]] %s47
    %s50 = sld [smem:[#allocation2 + $0x1]]
    %51 = vadd.xlane.f32.xlu0 %v30
    %v52 = vpop.xlane.xlu0 %51
    %v53 = vrot.slane %v52, 4
    %v54 = vadd.f32 %v52, %v53
    %v55 = vrot.slane %v54, 2
    %v56 = vadd.f32 %v54, %v55
    %v57 = vrot.slane %v56, 1
    %v58 = vadd.f32 %v56, %v57
    %s59 = vtos %v58
    %s60 = sadd.f32 %s50, %s59
    %s61 = scalar_lea.smem [#allocation2], 1
    %62 = sst [smem:[%s61]] %s60
    // Predicated region
    $region10: #{_scst_loss_and_score.2} parent=1 // pred_check
      %p63 = pneg %p22
    $region11: #{_scst_loss_and_score.2} parent=1 // pred_check_branch
      %65 = sbr.rel (%p63) target = $region13
    $region12: #{_scst_loss_and_score.2} parent=1 // pred_region
      %s66 = sld [smem:[#allocation2]]
      %s67 = smul.f32 %s66, -0.125
      %s68 = scalar_lea.smem [#allocation3], 0
      %69 = sst [smem:[%s68]] %s67
      %s70 = sld [smem:[#allocation2 + $0x1]]
      %s71 = smul.f32 %s70, 0.125
      %s72 = scalar_lea.smem [#allocation3], 1
      %73 = sst [smem:[%s72]] %s71
    $region13: #{_scst_loss_and_score.2} parent=1 // pred_fallthru
      _
    // Predicated region
    $region14: #{_scst_loss_and_score.2} parent=1 // pred_check
      _
    $region15: #{_scst_loss_and_score.2} parent=1 // pred_check_branch
      %75 = sbr.rel (0) target = $region17
    $region16: #{_scst_loss_and_score.2} parent=1 // pred_region
      %s77 = ssub.s32 16, 16
      %78 = vsyncadd [#allocation4], %s77
      %s80 = sshll.u32 %s1, 4
      %s81 = int_to_ptr.vmem [resolvable:$true] %s80
      %83 = dma.smem_to_vmem [#allocation3], 16, %s81, [#allocation4]
    $region17: #{_scst_loss_and_score.2} parent=1 // pred_fallthru
      _
    // Predicated region
    $region18: #{_scst_loss_and_score.2} parent=1 // pred_check
      _
    $region19: #{_scst_loss_and_score.2} parent=1 // pred_check_branch
      %85 = sbr.rel (0) target = $region21
    $region20: #{_scst_loss_and_score.2} parent=1 // pred_region
      %86 = dma.done [#allocation4], 16
    $region21: #{_scst_loss_and_score.2} parent=1 // pred_fallthru
      _
    %87 = sfence
    %88 = vsyncpa [#allocation4], 1

</llo_original>
